<compile_context>
chip_gen: v7x
topology: tpu7x:2x2x1
jax: 0.10.0
libtpu: 0.0.40
codegen_flags: <defaults>
</compile_context>

<pallas_src>
import math

import jax
import jax.numpy as jnp
from jax.experimental import pallas as pl
from jax.experimental.pallas import tpu as pltpu

SQRT2_INV = 0.7071067811865476      # mp_sum(a, b, t=0.5) = (a + b) / sqrt(2)
MP_SILU_SCALE = 1.0 / 0.596         # mp_silu(x) = silu(x) / 0.596 (EDM2 convention)


# ----------------------------- in-kernel helpers -----------------------------

def _mp_silu(x):
    # silu(x) / 0.596 with sigmoid = 1 / (1 + exp(-x)); exp and the approximate
    # reciprocal both run on the EUP slot, keeping the VPU free. f32 throughout.
    sig = pl.reciprocal(1.0 + jnp.exp(-x), approx=True)
    return (x * sig) * MP_SILU_SCALE


def _tap_stack(h, dilation, pos, T):
    """Build the (3*C, N) bf16 operand for a fused k=3 'same' conv.

    h: (C, N) f32 activations; the lane axis is a batch-major concatenation of
    length-T segments. Tap k (offset (k-1)*dilation) is a lane rotation of h
    (XLU slot, no unaligned VMEM slice copies) with an edge mask that reproduces
    the conv zero-padding and keeps batch segments independent.
    """
    N = h.shape[-1]
    parts = []
    for off in (-dilation, 0, dilation):          # matches fused weight tap order k=0,1,2
        if off == 0:
            parts.append(h)
        else:
            rolled = pltpu.roll(h, shift=(-off) % N, axis=1)   # rolled[:, n] = h[:, n+off]
            valid = (pos + off >= 0) & (pos + off < T)
            parts.append(jnp.where(valid, rolled, 0.0))
    return jnp.concatenate(parts, axis=0).astype(jnp.bfloat16)


# --------------------------------- kernel ------------------------------------

def decoder_block_kernel(x_ref, scale_ref, w_skip_ref, w1a_ref, w1b_ref, w2_ref, o_ref):
    N = x_ref.shape[-1]            # lane tile = bblk * T (whole batch segments)
    bblk = scale_ref.shape[0]
    T = N // bblk
    dim = o_ref.shape[0]

    xb = x_ref[...]                                                     # (2*dim, N) bf16
    pos = jax.lax.broadcasted_iota(jnp.int32, (1, N), 1) % T            # within-batch index

    # skip path: MPConv1d(2*dim -> dim, k=1) — one bf16 MXU dot, f32 accumulation
    x_skip = jnp.dot(w_skip_ref[...], xb, preferred_element_type=jnp.float32)

    # conv1: SiLU -> MPConv1d(2d->d, k=3, dil=3, pad=3) -> SiLU -> MPConv1d(d->d, k=3, pad=1)
    h = _mp_silu(xb.astype(jnp.float32))
    h = jnp.dot(w1a_ref[...], _tap_stack(h, 3, pos, T),
                preferred_element_type=jnp.float32)                     # (dim, N) f32
    h = _mp_silu(h)
    h = jnp.dot(w1b_ref[...], _tap_stack(h, 1, pos, T),
                preferred_element_type=jnp.float32)                     # (dim, N) f32

    # x = x * (emb + 1): per-batch (dim, 1) scale broadcast over its T lanes
    scale_row = jnp.concatenate(
        [jnp.broadcast_to(scale_ref[b], (dim, T)) for b in range(bblk)], axis=-1)
    h = h * scale_row

    # conv2: SiLU -> MPConv1d(d->d, k=3, pad=1)
    h = _mp_silu(h)
    h = jnp.dot(w2_ref[...], _tap_stack(h, 1, pos, T),
                preferred_element_type=jnp.float32)                     # (dim, N) f32

    # mp_sum(x, x_skip)
    o_ref[...] = ((h + x_skip) * SQRT2_INV).astype(o_ref.dtype)

    # TODO(synk): Upsample (ConvTranspose1d) and SelfAttention branches are disabled in
    # this config (upsample=None, attn=False) and are not implemented here.


# ------------------------------ host-side glue --------------------------------

def mp_normalize_weight(w, eps=1e-4):
    """EDM2-style MPConv weight prep: per-out-channel L2 normalize, scale 1/sqrt(fan_in)."""
    norm = jnp.sqrt(jnp.sum(jnp.square(w), axis=tuple(range(1, w.ndim)), keepdims=True))
    norm = norm + eps * math.sqrt(norm.size / w.size)
    fan_in = math.prod(w.shape[1:])
    return w / (norm * math.sqrt(float(fan_in)))


def _fuse_taps(w):
    """(Cout, Cin, K) MP-normalized conv weight -> (Cout, K*Cin) bf16 fused-tap layout."""
    wn = mp_normalize_weight(w)
    cout, cin, k = wn.shape
    return jnp.transpose(wn, (0, 2, 1)).reshape(cout, k * cin).astype(jnp.bfloat16)


def decoder_block(x, emb, raw_params, emb_gain, *, target_lanes=2048):
    """x: (B, 2*dim, T) f32, emb: (B, 4*dim, 1) f32 -> (B, dim, T) f32."""
    B, Cx, T = x.shape
    dim = Cx // 2
    assert T % 128 == 0, "T must be a multiple of 128 (lane width)"
    w_emb, w_skip, w_c1a, w_c1b, w_c2 = raw_params

    # ---- parameter / input prep (plain XLA glue) ----
    # emb path hoisted out of the kernel: scale = emb_gain * MPConv1d(emb) + 1, (B, dim, 1)
    w_emb_n = mp_normalize_weight(w_emb)[:, :, 0]                          # (dim, 4*dim)
    scale = emb_gain * jnp.einsum("oc,bcl->bol", w_emb_n, emb) + 1.0       # (B, dim, 1) f32

    w_skip_k = mp_normalize_weight(w_skip)[:, :, 0].astype(jnp.bfloat16)   # (dim, 2*dim)
    w1a = _fuse_taps(w_c1a)                                                # (dim, 3*2*dim)
    w1b = _fuse_taps(w_c1b)                                                # (dim, 3*dim)
    w2 = _fuse_taps(w_c2)                                                  # (dim, 3*dim)

    # Fold batch into the lane axis: (B, Cx, T) -> (Cx, B*T). bf16 halves the x DMA.
    x_l = jnp.transpose(x, (1, 0, 2)).reshape(Cx, B * T).astype(jnp.bfloat16)

    # Lane tile = bblk whole batch segments, so conv zero-padding == segment-edge masks.
    bblk = max(1, min(B, target_lanes // T))
    while B % bblk:
        bblk -= 1
    n_tile = bblk * T
    grid = (B * T // n_tile,)
    # TODO(synk): for very long T, additionally tile T with a 5-sample halo to bound VMEM.

    def full_spec(shape):
        n = len(shape)
        return pl.BlockSpec(shape, lambda i, _n=n: (0,) * _n)

    out_l = pl.pallas_call(
        decoder_block_kernel,
        out_shape=jax.ShapeDtypeStruct((dim, B * T), jnp.float32),
        grid=grid,
        in_specs=[
            pl.BlockSpec((Cx, n_tile), lambda i: (0, i)),        # x (lane-folded)
            pl.BlockSpec((bblk, dim, 1), lambda i: (i, 0, 0)),   # emb scale (per batch)
            full_spec(w_skip_k.shape),
            full_spec(w1a.shape),
            full_spec(w1b.shape),
            full_spec(w2.shape),
        ],
        out_specs=pl.BlockSpec((dim, n_tile), lambda i: (0, i)),
        compiler_params=pltpu.CompilerParams(
            dimension_semantics=("parallel",),
            vmem_limit_bytes=32 * 1024 * 1024,
        ),
    )(x_l, scale, w_skip_k, w1a, w1b, w2)

    return jnp.transpose(out_l.reshape(dim, B, T), (1, 0, 2))


# ------------------------------ pure-JAX reference ----------------------------

def ref_decoder_block(x, emb, raw_params, emb_gain):
    w_emb, w_skip, w_c1a, w_c1b, w_c2 = [mp_normalize_weight(w) for w in raw_params]

    def conv(v, w, dilation=1, padding=0):
        return jax.lax.conv_general_dilated(
            v, w, window_strides=(1,), padding=[(padding, padding)],
            rhs_dilation=(dilation,), dimension_numbers=("NCH", "OIH", "NCH"))

    def mp_silu(v):
        return jax.nn.silu(v) * MP_SILU_SCALE

    e = emb_gain * conv(emb, w_emb)
    x_skip = conv(x, w_skip)
    h = mp_silu(x)
    h = conv(h, w_c1a, dilation=3, padding=3)
    h = mp_silu(h)
    h = conv(h, w_c1b, padding=1)
    h = h * (e + 1.0)
    h = mp_silu(h)
    h = conv(h, w_c2, padding=1)
    return (h + x_skip) * SQRT2_INV


# ----------------------------------- main -------------------------------------

if __name__ == "__main__":
    B, dim, T = 2, 16, 128
    key = jax.random.PRNGKey(0)
    kx, ke, k0, k1, k2, k3, k4 = jax.random.split(key, 7)

    x = jax.random.normal(kx, (B, 2 * dim, T), jnp.float32)
    emb = jax.random.normal(ke, (B, 4 * dim, 1), jnp.float32)

    # MPConv raw weights (torch.randn init); shapes per DecoderBlock.__init__.
    raw_params = (
        jax.random.normal(k0, (dim, 4 * dim, 1), jnp.float32),   # self.emb
        jax.random.normal(k1, (dim, 2 * dim, 1), jnp.float32),   # self.skip_conv
        jax.random.normal(k2, (dim, 2 * dim, 3), jnp.float32),   # conv1[1]
        jax.random.normal(k3, (dim, dim, 3), jnp.float32),       # conv1[3]
        jax.random.normal(k4, (dim, dim, 3), jnp.float32),       # conv2[1]
    )
    # PyTorch inits emb_gain = 0; we use a nonzero value so the emb path is exercised.
    emb_gain = jnp.float32(0.3)

    out = decoder_block(x, emb, raw_params, emb_gain)
    out = jax.block_until_ready(out)

    ref = ref_decoder_block(x, emb, raw_params, emb_gain)
    assert out.shape == (B, dim, T)
    assert jnp.allclose(out, ref, atol=2e-2, rtol=2e-2), (
        f"max abs diff {jnp.max(jnp.abs(out - ref))}")
    print("KERNEL_OK")
</pallas_src>

<mosaic_0001>
module attributes {stable_mosaic.version = 11 : i64} {
  func.func @decoder_block_kernel(%arg0: i32, %arg1: memref<32x256xbf16, #tpu.memory_space<vmem>>, %arg2: memref<2x16x1xf32, #tpu.memory_space<vmem>>, %arg3: memref<16x32xbf16, #tpu.memory_space<vmem>>, %arg4: memref<16x96xbf16, #tpu.memory_space<vmem>>, %arg5: memref<16x48xbf16, #tpu.memory_space<vmem>>, %arg6: memref<16x48xbf16, #tpu.memory_space<vmem>>, %arg7: memref<16x256xf32, #tpu.memory_space<vmem>>) attributes {dimension_semantics = [#tpu.dimension_semantics<parallel>], iteration_bounds = array<i64: 1>, scalar_prefetch = 0 : i64, scratch_operands = 0 : i64, tpu.core_type = #tpu.core_type<tc>, window_params = [{transform_indices = @transform_0, window_bounds = array<i64: 32, 256>}, {transform_indices = @transform_1, window_bounds = array<i64: 2, 16, 1>}, {pipeline_mode = #tpu.pipeline_mode<synchronous>, transform_indices = @transform_2, window_bounds = array<i64: 16, 32>}, {pipeline_mode = #tpu.pipeline_mode<synchronous>, transform_indices = @transform_3, window_bounds = array<i64: 16, 96>}, {pipeline_mode = #tpu.pipeline_mode<synchronous>, transform_indices = @transform_4, window_bounds = array<i64: 16, 48>}, {pipeline_mode = #tpu.pipeline_mode<synchronous>, transform_indices = @transform_5, window_bounds = array<i64: 16, 48>}, {transform_indices = @transform_6, window_bounds = array<i64: 16, 256>}]} {
    %c0 = arith.constant 0 : index
    %c0_0 = arith.constant 0 : index
    %0 = vector.load %arg1[%c0, %c0_0] : memref<32x256xbf16, #tpu.memory_space<vmem>>, vector<32x256xbf16>
    %1 = tpu.iota {dimensions = array<i32: 1>} : vector<1x256xi32>
    %c128_i32 = arith.constant 128 : i32
    %c0_i32 = arith.constant 0 : i32
    %2 = arith.cmpi eq, %c128_i32, %c0_i32 : i32
    %c1_i32 = arith.constant 1 : i32
    %3 = arith.select %2, %c1_i32, %c128_i32 : i32
    %4 = vector.broadcast %3 : i32 to vector<1x256xi32>
    %5 = arith.remsi %1, %4 : vector<1x256xi32>
    %c0_i32_1 = arith.constant 0 : i32
    %6 = vector.broadcast %c0_i32_1 : i32 to vector<1x256xi32>
    %7 = arith.cmpi ne, %5, %6 : vector<1x256xi32>
    %c0_i32_2 = arith.constant 0 : i32
    %8 = vector.broadcast %c0_i32_2 : i32 to vector<1x256xi32>
    %9 = arith.cmpi slt, %5, %8 : vector<1x256xi32>
    %c0_i32_3 = arith.constant 0 : i32
    %10 = arith.cmpi slt, %3, %c0_i32_3 : i32
    %11 = vector.broadcast %10 : i1 to vector<1x256xi1>
    %12 = vector.broadcast %11 : vector<1x256xi1> to vector<1x256xi1>
    %13 = arith.xori %9, %12 : vector<1x256xi1>
    %14 = arith.andi %13, %7 : vector<1x256xi1>
    %15 = vector.broadcast %3 : i32 to vector<1x256xi32>
    %16 = arith.addi %5, %15 : vector<1x256xi32>
    %17 = arith.select %14, %16, %5 : vector<1x256xi1>, vector<1x256xi32>
    %c0_4 = arith.constant 0 : index
    %c0_5 = arith.constant 0 : index
    %18 = vector.load %arg3[%c0_4, %c0_5] : memref<16x32xbf16, #tpu.memory_space<vmem>>, vector<16x32xbf16>
    %cst = arith.constant dense<0.000000e+00> : vector<16x256xf32>
    %19 = tpu.matmul %18, %0, %cst {dimension_numbers = #tpu.dot_dimension_numbers<[1], [0], [0], [1], [0, 0, 1, 1], [], []>} : vector<16x32xbf16>, vector<32x256xbf16>, vector<16x256xf32> -> vector<16x256xf32>
    %20 = arith.extf %0 : vector<32x256xbf16> to vector<32x256xf32>
    %cst_6 = arith.constant 0.000000e+00 : f32
    %21 = vector.broadcast %cst_6 : f32 to vector<32x256xf32>
    %22 = arith.subf %21, %20 : vector<32x256xf32>
    %23 = math.exp %22 : vector<32x256xf32>
    %cst_7 = arith.constant 1.000000e+00 : f32
    %24 = vector.broadcast %cst_7 : f32 to vector<32x256xf32>
    %25 = arith.addf %24, %23 : vector<32x256xf32>
    %26 = tpu.reciprocal %25 {approx = true} : vector<32x256xf32> -> vector<32x256xf32>
    %27 = arith.mulf %20, %26 : vector<32x256xf32>
    %cst_8 = arith.constant 1.67785239 : f32
    %28 = vector.broadcast %cst_8 : f32 to vector<32x256xf32>
    %29 = arith.mulf %27, %28 : vector<32x256xf32>
    %c0_9 = arith.constant 0 : index
    %c0_10 = arith.constant 0 : index
    %30 = vector.load %arg4[%c0_9, %c0_10] : memref<16x96xbf16, #tpu.memory_space<vmem>>, vector<16x96xbf16>
    %c3_i32 = arith.constant 3 : i32
    %31 = tpu.dynamic_rotate %29 by %c3_i32 dim 1 : vector<32x256xf32>, i32 -> vector<32x256xf32>
    %c-3_i32 = arith.constant -3 : i32
    %32 = vector.broadcast %c-3_i32 : i32 to vector<1x256xi32>
    %33 = arith.addi %17, %32 : vector<1x256xi32>
    %c0_i32_11 = arith.constant 0 : i32
    %34 = vector.broadcast %c0_i32_11 : i32 to vector<1x256xi32>
    %35 = arith.cmpi sge, %33, %34 : vector<1x256xi32>
    %c-3_i32_12 = arith.constant -3 : i32
    %36 = vector.broadcast %c-3_i32_12 : i32 to vector<1x256xi32>
    %37 = arith.addi %17, %36 : vector<1x256xi32>
    %c128_i32_13 = arith.constant 128 : i32
    %38 = vector.broadcast %c128_i32_13 : i32 to vector<1x256xi32>
    %39 = arith.cmpi slt, %37, %38 : vector<1x256xi32>
    %40 = arith.andi %35, %39 : vector<1x256xi1>
    %cst_14 = arith.constant 0.000000e+00 : f32
    %41 = vector.shape_cast %40 : vector<1x256xi1> to vector<1x256xi1>
    %42 = vector.broadcast %41 : vector<1x256xi1> to vector<32x256xi1>
    %43 = vector.broadcast %cst_14 : f32 to vector<32x256xf32>
    %44 = arith.select %42, %31, %43 : vector<32x256xi1>, vector<32x256xf32>
    %c253_i32 = arith.constant 253 : i32
    %45 = tpu.dynamic_rotate %29 by %c253_i32 dim 1 : vector<32x256xf32>, i32 -> vector<32x256xf32>
    %c3_i32_15 = arith.constant 3 : i32
    %46 = vector.broadcast %c3_i32_15 : i32 to vector<1x256xi32>
    %47 = arith.addi %17, %46 : vector<1x256xi32>
    %c0_i32_16 = arith.constant 0 : i32
    %48 = vector.broadcast %c0_i32_16 : i32 to vector<1x256xi32>
    %49 = arith.cmpi sge, %47, %48 : vector<1x256xi32>
    %c3_i32_17 = arith.constant 3 : i32
    %50 = vector.broadcast %c3_i32_17 : i32 to vector<1x256xi32>
    %51 = arith.addi %17, %50 : vector<1x256xi32>
    %c128_i32_18 = arith.constant 128 : i32
    %52 = vector.broadcast %c128_i32_18 : i32 to vector<1x256xi32>
    %53 = arith.cmpi slt, %51, %52 : vector<1x256xi32>
    %54 = arith.andi %49, %53 : vector<1x256xi1>
    %cst_19 = arith.constant 0.000000e+00 : f32
    %55 = vector.shape_cast %54 : vector<1x256xi1> to vector<1x256xi1>
    %56 = vector.broadcast %55 : vector<1x256xi1> to vector<32x256xi1>
    %57 = vector.broadcast %cst_19 : f32 to vector<32x256xf32>
    %58 = arith.select %56, %45, %57 : vector<32x256xi1>, vector<32x256xf32>
    %59 = tpu.concatenate %44, %29, %58 in 0 : vector<32x256xf32>, vector<32x256xf32>, vector<32x256xf32> -> vector<96x256xf32>
    %60 = arith.truncf %59 : vector<96x256xf32> to vector<96x256xbf16>
    %cst_20 = arith.constant dense<0.000000e+00> : vector<16x256xf32>
    %61 = tpu.matmul %30, %60, %cst_20 {dimension_numbers = #tpu.dot_dimension_numbers<[1], [0], [0], [1], [0, 0, 1, 1], [], []>} : vector<16x96xbf16>, vector<96x256xbf16>, vector<16x256xf32> -> vector<16x256xf32>
    %cst_21 = arith.constant 0.000000e+00 : f32
    %62 = vector.broadcast %cst_21 : f32 to vector<16x256xf32>
    %63 = arith.subf %62, %61 : vector<16x256xf32>
    %64 = math.exp %63 : vector<16x256xf32>
    %cst_22 = arith.constant 1.000000e+00 : f32
    %65 = vector.broadcast %cst_22 : f32 to vector<16x256xf32>
    %66 = arith.addf %65, %64 : vector<16x256xf32>
    %67 = tpu.reciprocal %66 {approx = true} : vector<16x256xf32> -> vector<16x256xf32>
    %68 = arith.mulf %61, %67 : vector<16x256xf32>
    %cst_23 = arith.constant 1.67785239 : f32
    %69 = vector.broadcast %cst_23 : f32 to vector<16x256xf32>
    %70 = arith.mulf %68, %69 : vector<16x256xf32>
    %c0_24 = arith.constant 0 : index
    %c0_25 = arith.constant 0 : index
    %71 = vector.load %arg5[%c0_24, %c0_25] : memref<16x48xbf16, #tpu.memory_space<vmem>>, vector<16x48xbf16>
    %c1_i32_26 = arith.constant 1 : i32
    %72 = tpu.dynamic_rotate %70 by %c1_i32_26 dim 1 : vector<16x256xf32>, i32 -> vector<16x256xf32>
    %c-1_i32 = arith.constant -1 : i32
    %73 = vector.broadcast %c-1_i32 : i32 to vector<1x256xi32>
    %74 = arith.addi %17, %73 : vector<1x256xi32>
    %c0_i32_27 = arith.constant 0 : i32
    %75 = vector.broadcast %c0_i32_27 : i32 to vector<1x256xi32>
    %76 = arith.cmpi sge, %74, %75 : vector<1x256xi32>
    %c-1_i32_28 = arith.constant -1 : i32
    %77 = vector.broadcast %c-1_i32_28 : i32 to vector<1x256xi32>
    %78 = arith.addi %17, %77 : vector<1x256xi32>
    %c128_i32_29 = arith.constant 128 : i32
    %79 = vector.broadcast %c128_i32_29 : i32 to vector<1x256xi32>
    %80 = arith.cmpi slt, %78, %79 : vector<1x256xi32>
    %81 = arith.andi %76, %80 : vector<1x256xi1>
    %cst_30 = arith.constant 0.000000e+00 : f32
    %82 = vector.shape_cast %81 : vector<1x256xi1> to vector<1x256xi1>
    %83 = vector.broadcast %82 : vector<1x256xi1> to vector<16x256xi1>
    %84 = vector.broadcast %cst_30 : f32 to vector<16x256xf32>
    %85 = arith.select %83, %72, %84 : vector<16x256xi1>, vector<16x256xf32>
    %c255_i32 = arith.constant 255 : i32
    %86 = tpu.dynamic_rotate %70 by %c255_i32 dim 1 : vector<16x256xf32>, i32 -> vector<16x256xf32>
    %c1_i32_31 = arith.constant 1 : i32
    %87 = vector.broadcast %c1_i32_31 : i32 to vector<1x256xi32>
    %88 = arith.addi %17, %87 : vector<1x256xi32>
    %c0_i32_32 = arith.constant 0 : i32
    %89 = vector.broadcast %c0_i32_32 : i32 to vector<1x256xi32>
    %90 = arith.cmpi sge, %88, %89 : vector<1x256xi32>
    %c1_i32_33 = arith.constant 1 : i32
    %91 = vector.broadcast %c1_i32_33 : i32 to vector<1x256xi32>
    %92 = arith.addi %17, %91 : vector<1x256xi32>
    %c128_i32_34 = arith.constant 128 : i32
    %93 = vector.broadcast %c128_i32_34 : i32 to vector<1x256xi32>
    %94 = arith.cmpi slt, %92, %93 : vector<1x256xi32>
    %95 = arith.andi %90, %94 : vector<1x256xi1>
    %cst_35 = arith.constant 0.000000e+00 : f32
    %96 = vector.shape_cast %95 : vector<1x256xi1> to vector<1x256xi1>
    %97 = vector.broadcast %96 : vector<1x256xi1> to vector<16x256xi1>
    %98 = vector.broadcast %cst_35 : f32 to vector<16x256xf32>
    %99 = arith.select %97, %86, %98 : vector<16x256xi1>, vector<16x256xf32>
    %100 = tpu.concatenate %85, %70, %99 in 0 : vector<16x256xf32>, vector<16x256xf32>, vector<16x256xf32> -> vector<48x256xf32>
    %101 = arith.truncf %100 : vector<48x256xf32> to vector<48x256xbf16>
    %cst_36 = arith.constant dense<0.000000e+00> : vector<16x256xf32>
    %102 = tpu.matmul %71, %101, %cst_36 {dimension_numbers = #tpu.dot_dimension_numbers<[1], [0], [0], [1], [0, 0, 1, 1], [], []>} : vector<16x48xbf16>, vector<48x256xbf16>, vector<16x256xf32> -> vector<16x256xf32>
    %c0_37 = arith.constant 0 : index
    %c0_38 = arith.constant 0 : index
    %c0_39 = arith.constant 0 : index
    %103 = vector.load %arg2[%c0_37, %c0_38, %c0_39] : memref<2x16x1xf32, #tpu.memory_space<vmem>>, vector<1x16x1xf32>
    %104 = vector.shape_cast %103 : vector<1x16x1xf32> to vector<16x1xf32>
    %105 = vector.shape_cast %104 : vector<16x1xf32> to vector<16x1xf32>
    %106 = vector.broadcast %105 : vector<16x1xf32> to vector<16x128xf32>
    %c1 = arith.constant 1 : index
    %c0_40 = arith.constant 0 : index
    %c0_41 = arith.constant 0 : index
    %107 = vector.load %arg2[%c1, %c0_40, %c0_41] : memref<2x16x1xf32, #tpu.memory_space<vmem>>, vector<1x16x1xf32>
    %108 = vector.shape_cast %107 : vector<1x16x1xf32> to vector<16x1xf32>
    %109 = vector.shape_cast %108 : vector<16x1xf32> to vector<16x1xf32>
    %110 = vector.broadcast %109 : vector<16x1xf32> to vector<16x128xf32>
    %111 = tpu.concatenate %106, %110 in 1 : vector<16x128xf32>, vector<16x128xf32> -> vector<16x256xf32>
    %112 = arith.mulf %102, %111 : vector<16x256xf32>
    %cst_42 = arith.constant 0.000000e+00 : f32
    %113 = vector.broadcast %cst_42 : f32 to vector<16x256xf32>
    %114 = arith.subf %113, %112 : vector<16x256xf32>
    %115 = math.exp %114 : vector<16x256xf32>
    %cst_43 = arith.constant 1.000000e+00 : f32
    %116 = vector.broadcast %cst_43 : f32 to vector<16x256xf32>
    %117 = arith.addf %116, %115 : vector<16x256xf32>
    %118 = tpu.reciprocal %117 {approx = true} : vector<16x256xf32> -> vector<16x256xf32>
    %119 = arith.mulf %112, %118 : vector<16x256xf32>
    %cst_44 = arith.constant 1.67785239 : f32
    %120 = vector.broadcast %cst_44 : f32 to vector<16x256xf32>
    %121 = arith.mulf %119, %120 : vector<16x256xf32>
    %c0_45 = arith.constant 0 : index
    %c0_46 = arith.constant 0 : index
    %122 = vector.load %arg6[%c0_45, %c0_46] : memref<16x48xbf16, #tpu.memory_space<vmem>>, vector<16x48xbf16>
    %c1_i32_47 = arith.constant 1 : i32
    %123 = tpu.dynamic_rotate %121 by %c1_i32_47 dim 1 : vector<16x256xf32>, i32 -> vector<16x256xf32>
    %c-1_i32_48 = arith.constant -1 : i32
    %124 = vector.broadcast %c-1_i32_48 : i32 to vector<1x256xi32>
    %125 = arith.addi %17, %124 : vector<1x256xi32>
    %c0_i32_49 = arith.constant 0 : i32
    %126 = vector.broadcast %c0_i32_49 : i32 to vector<1x256xi32>
    %127 = arith.cmpi sge, %125, %126 : vector<1x256xi32>
    %c-1_i32_50 = arith.constant -1 : i32
    %128 = vector.broadcast %c-1_i32_50 : i32 to vector<1x256xi32>
    %129 = arith.addi %17, %128 : vector<1x256xi32>
    %c128_i32_51 = arith.constant 128 : i32
    %130 = vector.broadcast %c128_i32_51 : i32 to vector<1x256xi32>
    %131 = arith.cmpi slt, %129, %130 : vector<1x256xi32>
    %132 = arith.andi %127, %131 : vector<1x256xi1>
    %cst_52 = arith.constant 0.000000e+00 : f32
    %133 = vector.shape_cast %132 : vector<1x256xi1> to vector<1x256xi1>
    %134 = vector.broadcast %133 : vector<1x256xi1> to vector<16x256xi1>
    %135 = vector.broadcast %cst_52 : f32 to vector<16x256xf32>
    %136 = arith.select %134, %123, %135 : vector<16x256xi1>, vector<16x256xf32>
    %c255_i32_53 = arith.constant 255 : i32
    %137 = tpu.dynamic_rotate %121 by %c255_i32_53 dim 1 : vector<16x256xf32>, i32 -> vector<16x256xf32>
    %c1_i32_54 = arith.constant 1 : i32
    %138 = vector.broadcast %c1_i32_54 : i32 to vector<1x256xi32>
    %139 = arith.addi %17, %138 : vector<1x256xi32>
    %c0_i32_55 = arith.constant 0 : i32
    %140 = vector.broadcast %c0_i32_55 : i32 to vector<1x256xi32>
    %141 = arith.cmpi sge, %139, %140 : vector<1x256xi32>
    %c1_i32_56 = arith.constant 1 : i32
    %142 = vector.broadcast %c1_i32_56 : i32 to vector<1x256xi32>
    %143 = arith.addi %17, %142 : vector<1x256xi32>
    %c128_i32_57 = arith.constant 128 : i32
    %144 = vector.broadcast %c128_i32_57 : i32 to vector<1x256xi32>
    %145 = arith.cmpi slt, %143, %144 : vector<1x256xi32>
    %146 = arith.andi %141, %145 : vector<1x256xi1>
    %cst_58 = arith.constant 0.000000e+00 : f32
    %147 = vector.shape_cast %146 : vector<1x256xi1> to vector<1x256xi1>
    %148 = vector.broadcast %147 : vector<1x256xi1> to vector<16x256xi1>
    %149 = vector.broadcast %cst_58 : f32 to vector<16x256xf32>
    %150 = arith.select %148, %137, %149 : vector<16x256xi1>, vector<16x256xf32>
    %151 = tpu.concatenate %136, %121, %150 in 0 : vector<16x256xf32>, vector<16x256xf32>, vector<16x256xf32> -> vector<48x256xf32>
    %152 = arith.truncf %151 : vector<48x256xf32> to vector<48x256xbf16>
    %cst_59 = arith.constant dense<0.000000e+00> : vector<16x256xf32>
    %153 = tpu.matmul %122, %152, %cst_59 {dimension_numbers = #tpu.dot_dimension_numbers<[1], [0], [0], [1], [0, 0, 1, 1], [], []>} : vector<16x48xbf16>, vector<48x256xbf16>, vector<16x256xf32> -> vector<16x256xf32>
    %154 = arith.addf %153, %19 : vector<16x256xf32>
    %cst_60 = arith.constant 0.707106769 : f32
    %155 = vector.broadcast %cst_60 : f32 to vector<16x256xf32>
    %156 = arith.mulf %154, %155 : vector<16x256xf32>
    %c0_61 = arith.constant 0 : index
    %c0_62 = arith.constant 0 : index
    %157 = vector.load %arg7[%c0_61, %c0_62] : memref<16x256xf32, #tpu.memory_space<vmem>>, vector<16x256xf32>
    tpu.vector_store %arg7[%c0_61, %c0_62], %156 {strides = array<i32>} : memref<16x256xf32, #tpu.memory_space<vmem>>, vector<16x256xf32>,
    return
  }
  func.func @transform_0(%arg0: i32) -> (i32, i32) {
    %c0_i32 = arith.constant 0 : i32
    %c0_i32_0 = arith.constant 0 : i32
    return %c0_i32, %arg0 : i32, i32
  }
  func.func @transform_1(%arg0: i32) -> (i32, i32, i32) {
    %c0_i32 = arith.constant 0 : i32
    %c0_i32_0 = arith.constant 0 : i32
    %c0_i32_1 = arith.constant 0 : i32
    return %arg0, %c0_i32, %c0_i32_0 : i32, i32, i32
  }
  func.func @transform_2(%arg0: i32) -> (i32, i32) {
    %c0_i32 = arith.constant 0 : i32
    %c0_i32_0 = arith.constant 0 : i32
    %c0_i32_1 = arith.constant 0 : i32
    return %c0_i32, %c0_i32_0 : i32, i32
  }
  func.func @transform_3(%arg0: i32) -> (i32, i32) {
    %c0_i32 = arith.constant 0 : i32
    %c0_i32_0 = arith.constant 0 : i32
    %c0_i32_1 = arith.constant 0 : i32
    return %c0_i32, %c0_i32_0 : i32, i32
  }
  func.func @transform_4(%arg0: i32) -> (i32, i32) {
    %c0_i32 = arith.constant 0 : i32
    %c0_i32_0 = arith.constant 0 : i32
    %c0_i32_1 = arith.constant 0 : i32
    return %c0_i32, %c0_i32_0 : i32, i32
  }
  func.func @transform_5(%arg0: i32) -> (i32, i32) {
    %c0_i32 = arith.constant 0 : i32
    %c0_i32_0 = arith.constant 0 : i32
    %c0_i32_1 = arith.constant 0 : i32
    return %c0_i32, %c0_i32_0 : i32, i32
  }
  func.func @transform_6(%arg0: i32) -> (i32, i32) {
    %c0_i32 = arith.constant 0 : i32
    %c0_i32_0 = arith.constant 0 : i32
    return %c0_i32, %arg0 : i32, i32
  }
}

</mosaic_0001>

<llo_original>
// kernel: tpu_custom_call.1
$region0: #{tpu_custom_call.1}
  #allocation0 [shape = 'u32[]', space=smem, size = 0x4, offset = 0x4, fixed_abs, tag = 'smem constant byte address 0x4 - core index']
  #allocation1 [shape = 'u32[144,128]{1,0:T(1,128)}', space=vmem, size = 0x12000, scoped, tag = 'internal scratch']
  %s0 = inlined_call_operand.vmem [shape: bf16[32,256], index: 0, kind: input, shape index: {}]
  %s1 = inlined_call_operand.vmem [shape: f32[2,16,1], index: 1, kind: input, shape index: {}]
  %s2 = inlined_call_operand.vmem [shape: bf16[16,32], index: 2, kind: input, shape index: {}]
  %s3 = inlined_call_operand.hbm [shape: bf16[16,96], index: 3, kind: input, shape index: {}]
  %s4 = inlined_call_operand.vmem [shape: bf16[16,48], index: 4, kind: input, shape index: {}]
  %s5 = inlined_call_operand.hbm [shape: bf16[16,48], index: 5, kind: input, shape index: {}]
  %s6 = inlined_call_operand.hbm [shape: f32[16,256], index: 6, kind: output, shape index: {}]
  %s7 = sld [smem:[#allocation0]]
  $region42: #{tpu_custom_call.1} parent=0
    _
  %s9 = ssub.s32 1, %s7
  %s10 = scalar_select 0, %s9, %s7
  $region1: #{tpu_custom_call.1} parent=0
    #allocation2 [shape = 'u8[4096]{0}', space=vmem, size = 0x1000, scoped, tag = 'input window, operand 3, single buffered']
    #allocation3 [shape = 's32[1]{0}', space=sflag, size = 0x4, scoped, tag = 'scoped memory for tpu_custom_call.1']
    #allocation4 [shape = 's32[1]{0}', space=sflag, size = 0x4, scoped, tag = 'scoped memory for tpu_custom_call.1']
    #allocation5 [shape = 'u8[4096]{0}', space=vmem, size = 0x1000, scoped, tag = 'input window, operand 5, single buffered']
    #allocation6 [shape = 's32[1]{0}', space=sflag, size = 0x4, scoped, tag = 'scoped memory for tpu_custom_call.1']
    #allocation7 [shape = 'u8[16384]{0}', space=vmem, size = 0x4000, scoped, tag = 'output window, operand 0, single buffered']
    %11 = vsyncpa [#allocation3], 0
    %12 = vsyncpa [#allocation6], 0
    %13 = vsyncpa [#allocation4], 0
    // Predicated region
    $region2: #{tpu_custom_call.1} parent=1 // pred_check
      _
    $region3: #{tpu_custom_call.1} parent=1 // pred_check_branch
      %15 = sbr.rel (0) target = $region5
    $region4: #{tpu_custom_call.1} parent=1 // pred_region
      _
    $region5: #{tpu_custom_call.1} parent=1 // pred_fallthru
      _
    // Predicated region
    $region6: #{tpu_custom_call.1} parent=1 // pred_check
      _
    $region7: #{tpu_custom_call.1} parent=1 // pred_check_branch
      %17 = sbr.rel (0) target = $region9
    $region8: #{tpu_custom_call.1} parent=1 // pred_region
      _
    $region9: #{tpu_custom_call.1} parent=1 // pred_fallthru
      _
    // Predicated region
    $region10: #{tpu_custom_call.1} parent=1 // pred_check
      _
    $region11: #{tpu_custom_call.1} parent=1 // pred_check_branch
      %19 = sbr.rel (0) target = $region13
    $region12: #{tpu_custom_call.1} parent=1 // pred_region
      _
    $region13: #{tpu_custom_call.1} parent=1 // pred_fallthru
      _
    // Predicated region
    $region14: #{tpu_custom_call.1} parent=1 // pred_check
      _
    $region15: #{tpu_custom_call.1} parent=1 // pred_check_branch
      %21 = sbr.rel (0) target = $region17
    $region16: #{tpu_custom_call.1} parent=1 // pred_region
      %s23 = ssub.s32 128, 128
      %24 = vsyncadd [#allocation3], %s23
      %s25 = sshll.u32 [#allocation2], 4
      %s26 = int_to_ptr.vmem [resolvable:$true] %s25
      %31 = dma.hbm_to_vmem [thread:$0]  %s3, 128, %s26, [#allocation3], 64, 64, 4
    $region17: #{tpu_custom_call.1} parent=1 // pred_fallthru
      _
    // Predicated region
    $region18: #{tpu_custom_call.1} parent=1 // pred_check
      _
    $region19: #{tpu_custom_call.1} parent=1 // pred_check_branch
      %33 = sbr.rel (0) target = $region21
    $region20: #{tpu_custom_call.1} parent=1 // pred_region
      _
    $region21: #{tpu_custom_call.1} parent=1 // pred_fallthru
      _
    // Predicated region
    $region22: #{tpu_custom_call.1} parent=1 // pred_check
      _
    $region23: #{tpu_custom_call.1} parent=1 // pred_check_branch
      %35 = sbr.rel (0) target = $region25
    $region24: #{tpu_custom_call.1} parent=1 // pred_region
      %s37 = ssub.s32 128, 128
      %38 = vsyncadd [#allocation6], %s37
      %s39 = sshll.u32 [#allocation5], 4
      %s40 = int_to_ptr.vmem [resolvable:$true] %s39
      %45 = dma.hbm_to_vmem [thread:$0]  %s5, 128, %s40, [#allocation6], 64, 64, 4
    $region25: #{tpu_custom_call.1} parent=1 // pred_fallthru
      _
    // Predicated region
    $region26: #{tpu_custom_call.1} parent=1 // pred_check
      _
    $region27: #{tpu_custom_call.1} parent=1 // pred_check_branch
      %47 = sbr.rel (0) target = $region29
    $region28: #{tpu_custom_call.1} parent=1 // pred_region
      %48 = dma.done [#allocation3], 128
    $region29: #{tpu_custom_call.1} parent=1 // pred_fallthru
      _
    // Predicated region
    $region30: #{tpu_custom_call.1} parent=1 // pred_check
      _
    $region31: #{tpu_custom_call.1} parent=1 // pred_check_branch
      %50 = sbr.rel (0) target = $region33
    $region32: #{tpu_custom_call.1} parent=1 // pred_region
      %51 = dma.done [#allocation6], 128
    $region33: #{tpu_custom_call.1} parent=1 // pred_fallthru
      _
    %v53 = vld [vmem:[%s0] sm:$0xff]
    %v54 = vld [vmem:[%s0 + $0x8] sm:$0xff]
    %v55 = vld [vmem:[%s0 + $0x10] sm:$0xff]
    %v56 = vld [vmem:[%s0 + $0x18] sm:$0xff]
    %v57 = vlaneseq
    %v58 = vand.u32 %v57, 127
    %v59 = vadd.s32 %v58, 128
    %vm60 = vcmp.lt.s32.totalorder %v58, 0
    %v61 = vsub.s32 0, %v58
    %v62 = vsel %vm60, %v61, %v58
    %v63 = vshrl.u32 %v62, 7
    %v64 = vand.u32 %v62, 127
    %v65 = vsub.s32 0, %v64
    %v66 = vsel %vm60, %v65, %v64
    %vm67 = vcmp.lt.s32.totalorder %v59, 0
    %v68 = vsub.s32 0, %v59
    %v69 = vsel %vm67, %v68, %v59
    %v70 = vshrl.u32 %v69, 7
    %v71 = vand.u32 %v69, 127
    %v72 = vsub.s32 0, %v71
    %v73 = vsel %vm67, %v72, %v71
    %vm74 = vcmp.ne.s32.totalorder %v66, 0
    %vm75 = vcmp.ne.s32.totalorder %v73, 0
    %vm76 = vcmp.lt.s32.totalorder %v66, 0
    %vm77 = vcmp.lt.s32.totalorder %v73, 0
    %vm78 = vmand %vm76, %vm74
    %vm79 = vmand %vm77, %vm75
    %v80 = vadd.s32 %v66, 128
    %v81 = vadd.s32 %v73, 128
    %v82 = vsel %vm78, %v80, %v66
    %v83 = vsel %vm79, %v81, %v73
    %v84 = vld [vmem:[%s2] sm:$0xf]
    %v85 = vld [vmem:[%s2 + $0x4] sm:$0xf]
    %v88 = vunpack.c.l.b16 %v84
    %v89 = vunpack.c.l.b16 %v85
    %v90 = vpack.c.b16 %v89, %v88
    %v95 = vunpack.c.l.b16 %v53
    %v96 = vunpack.c.h.b16 %v53
    %v97 = vunpack.c.l.b16 %v54
    %v98 = vunpack.c.h.b16 %v54
    %v99 = vunpack.c.l.b16 %v55
    %v100 = vunpack.c.h.b16 %v55
    %v101 = vunpack.c.l.b16 %v56
    %v102 = vunpack.c.h.b16 %v56
    %v103 = vpack.c.b16 %v97, %v95
    %v104 = vpack.c.b16 %v98, %v96
    %v105 = vpack.c.b16 %v101, %v99
    %v106 = vpack.c.b16 %v102, %v100
    %vm111 = vcmask 261120
    %v113 = vsel %vm111, %v90, 0
    %115 = vmatprep.subr.bf16.mxu0 %v104
    %116 = vmatpush1.bf16.msra.mxu0 %v103
    %117 = vmatprep.subr.bf16.mxu0 %v106
    %118 = vmatpush1.bf16.msra.mxu0 %v105
    %119 = vmatprep.subr.bf16.mxu0 0
    %120 = vmatpush1.bf16.msra.mxu0 0
    %121 = vmatprep.subr.bf16.mxu0 0
    %122 = vmatpush1.bf16.msra.mxu0 0
    %123 = vmatprep.subr.bf16.mxu0 0
    %124 = vmatpush1.bf16.msra.mxu0 0
    %125 = vmatprep.subr.bf16.mxu0 0
    %126 = vmatpush1.bf16.msra.mxu0 0
    %127 = vmatprep.subr.bf16.mxu0 0
    %128 = vmatpush1.bf16.msra.mxu0 0
    %129 = vmatprep.subr.bf16.mxu0 0
    %130 = vmatpush1.bf16.msra.mxu0 0
    %131 = vmatprep.subr.bf16.mxu0 0
    %132 = vmatpush1.bf16.msra.mxu0 0
    %133 = vmatprep.subr.bf16.mxu0 0
    %134 = vmatpush1.bf16.msra.mxu0 0
    %135 = vmatprep.subr.bf16.mxu0 0
    %136 = vmatpush1.bf16.msra.mxu0 0
    %137 = vmatprep.subr.bf16.mxu0 0
    %138 = vmatpush1.bf16.msra.mxu0 0
    %139 = vmatprep.subr.bf16.mxu0 0
    %140 = vmatpush1.bf16.msra.mxu0 0
    %141 = vmatprep.subr.bf16.mxu0 0
    %142 = vmatpush1.bf16.msra.mxu0 0
    %143 = vmatprep.subr.bf16.mxu0 0
    %144 = vmatpush1.bf16.msra.mxu0 0
    %145 = vmatprep.subr.bf16.mxu0 0
    %146 = vmatpush1.bf16.msra.mxu0 0
    %147 = vmatprep.mubr.bf16.mxu0 0
    %148 = vmatmul.mubr.bf16.gmra.mrb[0].mxu0 %v113
    %v149 = vpop.f32.mrb[0].mxu0
    %v150 = vadd.f32 0.0, %v149
    %v151 = vpop.f32.mrb[0].mxu0
    %v152 = vadd.f32 0.0, %v151
    %v153 = vpop.f32.mrb[0].mxu0
    %v154 = vadd.f32 0.0, %v153
    %v155 = vpop.f32.mrb[0].mxu0
    %v156 = vadd.f32 0.0, %v155
    %157 = vdwg.mxu0
    %v158 = vunpack.c.l.bf16 %v53
    %v159 = vunpack.c.h.bf16 %v53
    %v160 = vunpack.c.l.bf16 %v54
    %v161 = vunpack.c.h.bf16 %v54
    %v162 = vunpack.c.l.bf16 %v55
    %v163 = vunpack.c.h.bf16 %v55
    %v164 = vunpack.c.l.bf16 %v56
    %v165 = vunpack.c.h.bf16 %v56
    %v166 = vsub.f32 0.0, %v158
    %v167 = vsub.f32 0.0, %v159
    %v168 = vsub.f32 0.0, %v160
    %v169 = vsub.f32 0.0, %v161
    %v170 = vsub.f32 0.0, %v162
    %v171 = vsub.f32 0.0, %v163
    %v172 = vsub.f32 0.0, %v164
    %v173 = vsub.f32 0.0, %v165
    %v174 = vmul.f32 %v166, 1.442695
    %v175 = vpow.pop %v174
    %v176 = vmul.f32 %v167, 1.442695
    %v177 = vpow.pop %v176
    %v178 = vmul.f32 %v168, 1.442695
    %v179 = vpow.pop %v178
    %v180 = vmul.f32 %v169, 1.442695
    %v181 = vpow.pop %v180
    %v182 = vmul.f32 %v170, 1.442695
    %v183 = vpow.pop %v182
    %v184 = vmul.f32 %v171, 1.442695
    %v185 = vpow.pop %v184
    %v186 = vmul.f32 %v172, 1.442695
    %v187 = vpow.pop %v186
    %v188 = vmul.f32 %v173, 1.442695
    %v189 = vpow.pop %v188
    %v190 = vadd.f32 %v175, 1.0
    %v191 = vadd.f32 %v177, 1.0
    %v192 = vadd.f32 %v179, 1.0
    %v193 = vadd.f32 %v181, 1.0
    %v194 = vadd.f32 %v183, 1.0
    %v195 = vadd.f32 %v185, 1.0
    %v196 = vadd.f32 %v187, 1.0
    %v197 = vadd.f32 %v189, 1.0
    %v198 = vrcp.pop %v190
    %v199 = vrcp.pop %v191
    %v200 = vrcp.pop %v192
    %v201 = vrcp.pop %v193
    %v202 = vrcp.pop %v194
    %v203 = vrcp.pop %v195
    %v204 = vrcp.pop %v196
    %v205 = vrcp.pop %v197
    %v206 = vmul.f32 %v158, %v198
    %v207 = vmul.f32 %v159, %v199
    %v208 = vmul.f32 %v160, %v200
    %v209 = vmul.f32 %v161, %v201
    %v210 = vmul.f32 %v162, %v202
    %v211 = vmul.f32 %v163, %v203
    %v212 = vmul.f32 %v164, %v204
    %v213 = vmul.f32 %v165, %v205
    %v214 = vmul.f32 %v206, 1.6778524
    %v215 = vmul.f32 %v207, 1.6778524
    %v216 = vmul.f32 %v208, 1.6778524
    %v217 = vmul.f32 %v209, 1.6778524
    %v218 = vmul.f32 %v210, 1.6778524
    %v219 = vmul.f32 %v211, 1.6778524
    %v220 = vmul.f32 %v212, 1.6778524
    %v221 = vmul.f32 %v213, 1.6778524
    %v222 = vld [vmem:[#allocation2] sm:$0xf]
    %v223 = vld [vmem:[#allocation2 + $0x4] sm:$0xf]
    %224 = vrot.lane.b32.xlu0 %v214, 3
    %v225 = vpop.permute.xlu0 %224
    %226 = vrot.lane.b32.xlu0 %v216, 3
    %v227 = vpop.permute.xlu0 %226
    %228 = vrot.lane.b32.xlu0 %v218, 3
    %v229 = vpop.permute.xlu0 %228
    %230 = vrot.lane.b32.xlu0 %v220, 3
    %v231 = vpop.permute.xlu0 %230
    %232 = vrot.lane.b32.xlu0 %v215, 3
    %v233 = vpop.permute.xlu0 %232
    %234 = vrot.lane.b32.xlu0 %v217, 3
    %v235 = vpop.permute.xlu0 %234
    %236 = vrot.lane.b32.xlu0 %v219, 3
    %v237 = vpop.permute.xlu0 %236
    %238 = vrot.lane.b32.xlu0 %v221, 3
    %v239 = vpop.permute.xlu0 %238
    %vm240 = vcmp.lt.s32.totalorder %v58, 3
    %v241 = vsel %vm240, %v225, %v233
    %v242 = vsel %vm240, %v227, %v235
    %v243 = vsel %vm240, %v229, %v237
    %v244 = vsel %vm240, %v231, %v239
    %v245 = vsel %vm240, %v233, %v225
    %v246 = vsel %vm240, %v235, %v227
    %v247 = vsel %vm240, %v237, %v229
    %v248 = vsel %vm240, %v239, %v231
    %v249 = vadd.s32 %v82, 4294967293
    %v250 = vadd.s32 %v83, 4294967293
    %vm251 = vcmp.ge.s32.totalorder %v249, 0
    %vm252 = vcmp.ge.s32.totalorder %v250, 0
    %vm253 = vcmp.lt.s32.totalorder %v249, 128
    %vm254 = vcmp.lt.s32.totalorder %v250, 128
    %vm255 = vmand %vm251, %vm253
    %vm256 = vmand %vm252, %vm254
    %v257 = vsel %vm255, 1, 0
    %v258 = vsel %vm256, 1, 0
    %vm259 = vcmp.eq.s32.totalorder %v257, 1
    %vm260 = vcmp.eq.s32.totalorder %v258, 1
    %v261 = vsel %vm259, %v245, 0.0
    %v262 = vsel %vm260, %v241, 0.0
    %v263 = vsel %vm259, %v246, 0.0
    %v264 = vsel %vm260, %v242, 0.0
    %v265 = vsel %vm259, %v247, 0.0
    %v266 = vsel %vm260, %v243, 0.0
    %v267 = vsel %vm259, %v248, 0.0
    %v268 = vsel %vm260, %v244, 0.0
    %269 = vrot.lane.b32.xlu0 %v214, 125
    %v270 = vpop.permute.xlu0 %269
    %271 = vrot.lane.b32.xlu0 %v216, 125
    %v272 = vpop.permute.xlu0 %271
    %273 = vrot.lane.b32.xlu0 %v218, 125
    %v274 = vpop.permute.xlu0 %273
    %275 = vrot.lane.b32.xlu0 %v220, 125
    %v276 = vpop.permute.xlu0 %275
    %277 = vrot.lane.b32.xlu0 %v215, 125
    %v278 = vpop.permute.xlu0 %277
    %279 = vrot.lane.b32.xlu0 %v217, 125
    %v280 = vpop.permute.xlu0 %279
    %281 = vrot.lane.b32.xlu0 %v219, 125
    %v282 = vpop.permute.xlu0 %281
    %283 = vrot.lane.b32.xlu0 %v221, 125
    %v284 = vpop.permute.xlu0 %283
    %vm285 = vcmp.lt.s32.totalorder %v58, 125
    %v286 = vsel %vm285, %v270, %v278
    %v287 = vsel %vm285, %v272, %v280
    %v288 = vsel %vm285, %v274, %v282
    %v289 = vsel %vm285, %v276, %v284
    %v290 = vsel %vm285, %v278, %v270
    %v291 = vsel %vm285, %v280, %v272
    %v292 = vsel %vm285, %v282, %v274
    %v293 = vsel %vm285, %v284, %v276
    %v294 = vadd.s32 %v82, 3
    %v295 = vadd.s32 %v83, 3
    %vm296 = vcmp.ge.s32.totalorder %v294, 0
    %vm297 = vcmp.ge.s32.totalorder %v295, 0
    %vm298 = vcmp.lt.s32.totalorder %v294, 128
    %vm299 = vcmp.lt.s32.totalorder %v295, 128
    %vm300 = vmand %vm296, %vm298
    %vm301 = vmand %vm297, %vm299
    %v302 = vsel %vm300, 1, 0
    %v303 = vsel %vm301, 1, 0
    %vm304 = vcmp.eq.s32.totalorder %v302, 1
    %vm305 = vcmp.eq.s32.totalorder %v303, 1
    %v306 = vsel %vm304, %v286, 0.0
    %v307 = vsel %vm305, %v290, 0.0
    %v308 = vsel %vm304, %v287, 0.0
    %v309 = vsel %vm305, %v291, 0.0
    %v310 = vsel %vm304, %v288, 0.0
    %v311 = vsel %vm305, %v292, 0.0
    %v312 = vsel %vm304, %v289, 0.0
    %v313 = vsel %vm305, %v293, 0.0
    %v314 = vpack.c.bf16 %v263, %v261
    %v315 = vpack.c.bf16 %v264, %v262
    %v316 = vpack.c.bf16 %v267, %v265
    %v317 = vpack.c.bf16 %v268, %v266
    %v318 = vpack.c.bf16 %v216, %v214
    %v319 = vpack.c.bf16 %v217, %v215
    %v320 = vpack.c.bf16 %v220, %v218
    %v321 = vpack.c.bf16 %v221, %v219
    %v322 = vpack.c.bf16 %v308, %v306
    %v323 = vpack.c.bf16 %v309, %v307
    %v324 = vpack.c.bf16 %v312, %v310
    %v325 = vpack.c.bf16 %v313, %v311
    %v328 = vunpack.c.l.b16 %v222
    %v329 = vunpack.c.l.b16 %v223
    %v330 = vpack.c.b16 %v329, %v328
    %vm331 = vcmask 785408
    %v333 = vsel %vm331, %v330, 0
    %335 = vmatprep.subr.bf16.mxu0 %v315
    %336 = vmatpush1.bf16.msra.mxu0 %v314
    %337 = vmatprep.subr.bf16.mxu0 %v317
    %338 = vmatpush1.bf16.msra.mxu0 %v316
    %339 = vmatprep.subr.bf16.mxu0 %v319
    %340 = vmatpush1.bf16.msra.mxu0 %v318
    %341 = vmatprep.subr.bf16.mxu0 %v321
    %342 = vmatpush1.bf16.msra.mxu0 %v320
    %343 = vmatprep.subr.bf16.mxu0 %v323
    %344 = vmatpush1.bf16.msra.mxu0 %v322
    %345 = vmatprep.subr.bf16.mxu0 %v325
    %346 = vmatpush1.bf16.msra.mxu0 %v324
    %347 = vmatprep.subr.bf16.mxu0 0
    %348 = vmatpush1.bf16.msra.mxu0 0
    %349 = vmatprep.subr.bf16.mxu0 0
    %350 = vmatpush1.bf16.msra.mxu0 0
    %351 = vmatprep.subr.bf16.mxu0 0
    %352 = vmatpush1.bf16.msra.mxu0 0
    %353 = vmatprep.subr.bf16.mxu0 0
    %354 = vmatpush1.bf16.msra.mxu0 0
    %355 = vmatprep.subr.bf16.mxu0 0
    %356 = vmatpush1.bf16.msra.mxu0 0
    %357 = vmatprep.subr.bf16.mxu0 0
    %358 = vmatpush1.bf16.msra.mxu0 0
    %359 = vmatprep.subr.bf16.mxu0 0
    %360 = vmatpush1.bf16.msra.mxu0 0
    %361 = vmatprep.subr.bf16.mxu0 0
    %362 = vmatpush1.bf16.msra.mxu0 0
    %363 = vmatprep.subr.bf16.mxu0 0
    %364 = vmatpush1.bf16.msra.mxu0 0
    %365 = vmatprep.subr.bf16.mxu0 0
    %366 = vmatpush1.bf16.msra.mxu0 0
    %367 = vmatprep.mubr.bf16.mxu0 0
    %368 = vmatmul.mubr.bf16.gmra.mrb[0].mxu0 %v333
    %v369 = vpop.f32.mrb[0].mxu0
    %v370 = vadd.f32 0.0, %v369
    %v371 = vpop.f32.mrb[0].mxu0
    %v372 = vadd.f32 0.0, %v371
    %v373 = vpop.f32.mrb[0].mxu0
    %v374 = vadd.f32 0.0, %v373
    %v375 = vpop.f32.mrb[0].mxu0
    %v376 = vadd.f32 0.0, %v375
    %377 = vdwg.mxu0
    %v378 = vsub.f32 0.0, %v370
    %v379 = vsub.f32 0.0, %v372
    %v380 = vsub.f32 0.0, %v374
    %v381 = vsub.f32 0.0, %v376
    %v382 = vmul.f32 %v378, 1.442695
    %v383 = vpow.pop %v382
    %v384 = vmul.f32 %v379, 1.442695
    %v385 = vpow.pop %v384
    %v386 = vmul.f32 %v380, 1.442695
    %v387 = vpow.pop %v386
    %v388 = vmul.f32 %v381, 1.442695
    %v389 = vpow.pop %v388
    %v390 = vadd.f32 %v383, 1.0
    %v391 = vadd.f32 %v385, 1.0
    %v392 = vadd.f32 %v387, 1.0
    %v393 = vadd.f32 %v389, 1.0
    %v394 = vrcp.pop %v390
    %v395 = vrcp.pop %v391
    %v396 = vrcp.pop %v392
    %v397 = vrcp.pop %v393
    %v398 = vmul.f32 %v370, %v394
    %v399 = vmul.f32 %v372, %v395
    %v400 = vmul.f32 %v374, %v396
    %v401 = vmul.f32 %v376, %v397
    %v402 = vmul.f32 %v398, 1.6778524
    %v403 = vmul.f32 %v399, 1.6778524
    %v404 = vmul.f32 %v400, 1.6778524
    %v405 = vmul.f32 %v401, 1.6778524
    %v406 = vld [vmem:[%s4] sm:$0xf]
    %v407 = vld [vmem:[%s4 + $0x4] sm:$0xf]
    %408 = vrot.lane.b32.xlu0 %v402, 1
    %v409 = vpop.permute.xlu0 %408
    %410 = vrot.lane.b32.xlu0 %v404, 1
    %v411 = vpop.permute.xlu0 %410
    %412 = vrot.lane.b32.xlu0 %v403, 1
    %v413 = vpop.permute.xlu0 %412
    %414 = vrot.lane.b32.xlu0 %v405, 1
    %v415 = vpop.permute.xlu0 %414
    %vm416 = vcmp.lt.s32.totalorder %v58, 1
    %v417 = vsel %vm416, %v409, %v413
    %v418 = vsel %vm416, %v411, %v415
    %v419 = vsel %vm416, %v413, %v409
    %v420 = vsel %vm416, %v415, %v411
    %v421 = vadd.s32 %v82, 4294967295
    %v422 = vadd.s32 %v83, 4294967295
    %vm423 = vcmp.ge.s32.totalorder %v421, 0
    %vm424 = vcmp.ge.s32.totalorder %v422, 0
    %vm425 = vcmp.lt.s32.totalorder %v421, 128
    %vm426 = vcmp.lt.s32.totalorder %v422, 128
    %vm427 = vmand %vm423, %vm425
    %vm428 = vmand %vm424, %vm426
    %v429 = vsel %vm427, 1, 0
    %v430 = vsel %vm428, 1, 0
    %vm431 = vcmp.eq.s32.totalorder %v429, 1
    %vm432 = vcmp.eq.s32.totalorder %v430, 1
    %v433 = vsel %vm431, %v419, 0.0
    %v434 = vsel %vm432, %v417, 0.0
    %v435 = vsel %vm431, %v420, 0.0
    %v436 = vsel %vm432, %v418, 0.0
    %437 = vrot.lane.b32.xlu0 %v402, 127
    %v438 = vpop.permute.xlu0 %437
    %439 = vrot.lane.b32.xlu0 %v404, 127
    %v440 = vpop.permute.xlu0 %439
    %441 = vrot.lane.b32.xlu0 %v403, 127
    %v442 = vpop.permute.xlu0 %441
    %443 = vrot.lane.b32.xlu0 %v405, 127
    %v444 = vpop.permute.xlu0 %443
    %vm445 = vcmp.lt.s32.totalorder %v58, 127
    %v446 = vsel %vm445, %v438, %v442
    %v447 = vsel %vm445, %v440, %v444
    %v448 = vsel %vm445, %v442, %v438
    %v449 = vsel %vm445, %v444, %v440
    %v450 = vadd.s32 %v82, 1
    %v451 = vadd.s32 %v83, 1
    %vm452 = vcmp.ge.s32.totalorder %v450, 0
    %vm453 = vcmp.ge.s32.totalorder %v451, 0
    %vm454 = vcmp.lt.s32.totalorder %v450, 128
    %vm455 = vcmp.lt.s32.totalorder %v451, 128
    %vm456 = vmand %vm452, %vm454
    %vm457 = vmand %vm453, %vm455
    %v458 = vsel %vm456, 1, 0
    %v459 = vsel %vm457, 1, 0
    %vm460 = vcmp.eq.s32.totalorder %v458, 1
    %vm461 = vcmp.eq.s32.totalorder %v459, 1
    %v462 = vsel %vm460, %v446, 0.0
    %v463 = vsel %vm461, %v448, 0.0
    %v464 = vsel %vm460, %v447, 0.0
    %v465 = vsel %vm461, %v449, 0.0
    %v466 = vpack.c.bf16 %v435, %v433
    %v467 = vpack.c.bf16 %v436, %v434
    %v468 = vpack.c.bf16 %v404, %v402
    %v469 = vpack.c.bf16 %v405, %v403
    %v470 = vpack.c.bf16 %v464, %v462
    %v471 = vpack.c.bf16 %v465, %v463
    %v474 = vunpack.c.l.b16 %v406
    %v475 = vunpack.c.l.b16 %v407
    %v476 = vpack.c.b16 %v475, %v474
    %vm477 = vcmask 392192
    %v479 = vsel %vm477, %v476, 0
    %481 = vmatprep.subr.bf16.mxu0 %v467
    %482 = vmatpush1.bf16.msra.mxu0 %v466
    %483 = vmatprep.subr.bf16.mxu0 %v469
    %484 = vmatpush1.bf16.msra.mxu0 %v468
    %485 = vmatprep.subr.bf16.mxu0 %v471
    %486 = vmatpush1.bf16.msra.mxu0 %v470
    %487 = vmatprep.subr.bf16.mxu0 0
    %488 = vmatpush1.bf16.msra.mxu0 0
    %489 = vmatprep.subr.bf16.mxu0 0
    %490 = vmatpush1.bf16.msra.mxu0 0
    %491 = vmatprep.subr.bf16.mxu0 0
    %492 = vmatpush1.bf16.msra.mxu0 0
    %493 = vmatprep.subr.bf16.mxu0 0
    %494 = vmatpush1.bf16.msra.mxu0 0
    %495 = vmatprep.subr.bf16.mxu0 0
    %496 = vmatpush1.bf16.msra.mxu0 0
    %497 = vmatprep.subr.bf16.mxu0 0
    %498 = vmatpush1.bf16.msra.mxu0 0
    %499 = vmatprep.subr.bf16.mxu0 0
    %500 = vmatpush1.bf16.msra.mxu0 0
    %501 = vmatprep.subr.bf16.mxu0 0
    %502 = vmatpush1.bf16.msra.mxu0 0
    %503 = vmatprep.subr.bf16.mxu0 0
    %504 = vmatpush1.bf16.msra.mxu0 0
    %505 = vmatprep.subr.bf16.mxu0 0
    %506 = vmatpush1.bf16.msra.mxu0 0
    %507 = vmatprep.subr.bf16.mxu0 0
    %508 = vmatpush1.bf16.msra.mxu0 0
    %509 = vmatprep.subr.bf16.mxu0 0
    %510 = vmatpush1.bf16.msra.mxu0 0
    %511 = vmatprep.subr.bf16.mxu0 0
    %512 = vmatpush1.bf16.msra.mxu0 0
    %513 = vmatprep.mubr.bf16.mxu0 0
    %514 = vmatmul.mubr.bf16.gmra.mrb[0].mxu0 %v479
    %v515 = vpop.f32.mrb[0].mxu0
    %v516 = vadd.f32 0.0, %v515
    %v517 = vpop.f32.mrb[0].mxu0
    %v518 = vadd.f32 0.0, %v517
    %v519 = vpop.f32.mrb[0].mxu0
    %v520 = vadd.f32 0.0, %v519
    %v521 = vpop.f32.mrb[0].mxu0
    %v522 = vadd.f32 0.0, %v521
    %523 = vdwg.mxu0
    %v524 = vld [vmem:[%s1] sm:$0xff]
    %v525 = vld [vmem:[%s1 + $0x8] sm:$0xff]
    %527 = vset.pattern.permute.xlu0 0
    %528 = vperm.xlu0 %527, %v524
    %v529 = vpop.permute.xlu0 %528
    %532 = vset.pattern.permute.xlu0 0
    %533 = vperm.xlu0 %532, %v525
    %v534 = vpop.permute.xlu0 %533
    %s536 = scalar_lea.vmem %s1, 16
    %v537 = vld [vmem:[%s536] sm:$0xff]
    %v538 = vld [vmem:[%s536 + $0x8] sm:$0xff]
    %540 = vset.pattern.permute.xlu0 0
    %541 = vperm.xlu0 %540, %v537
    %v542 = vpop.permute.xlu0 %541
    %545 = vset.pattern.permute.xlu0 0
    %546 = vperm.xlu0 %545, %v538
    %v547 = vpop.permute.xlu0 %546
    %v549 = vmul.f32 %v516, %v529
    %v550 = vmul.f32 %v518, %v542
    %v551 = vmul.f32 %v520, %v534
    %v552 = vmul.f32 %v522, %v547
    %v553 = vsub.f32 0.0, %v549
    %v554 = vsub.f32 0.0, %v550
    %v555 = vsub.f32 0.0, %v551
    %v556 = vsub.f32 0.0, %v552
    %v557 = vmul.f32 %v553, 1.442695
    %v558 = vpow.pop %v557
    %v559 = vmul.f32 %v554, 1.442695
    %v560 = vpow.pop %v559
    %v561 = vmul.f32 %v555, 1.442695
    %v562 = vpow.pop %v561
    %v563 = vmul.f32 %v556, 1.442695
    %v564 = vpow.pop %v563
    %v565 = vadd.f32 %v558, 1.0
    %v566 = vadd.f32 %v560, 1.0
    %v567 = vadd.f32 %v562, 1.0
    %v568 = vadd.f32 %v564, 1.0
    %v569 = vrcp.pop %v565
    %v570 = vrcp.pop %v566
    %v571 = vrcp.pop %v567
    %v572 = vrcp.pop %v568
    %v573 = vmul.f32 %v549, %v569
    %v574 = vmul.f32 %v550, %v570
    %v575 = vmul.f32 %v551, %v571
    %v576 = vmul.f32 %v552, %v572
    %v577 = vmul.f32 %v573, 1.6778524
    %v578 = vmul.f32 %v574, 1.6778524
    %v579 = vmul.f32 %v575, 1.6778524
    %v580 = vmul.f32 %v576, 1.6778524
    %v581 = vld [vmem:[#allocation5] sm:$0xf]
    %v582 = vld [vmem:[#allocation5 + $0x4] sm:$0xf]
    %583 = vrot.lane.b32.xlu0 %v577, 1
    %v584 = vpop.permute.xlu0 %583
    %585 = vrot.lane.b32.xlu0 %v579, 1
    %v586 = vpop.permute.xlu0 %585
    %587 = vrot.lane.b32.xlu0 %v578, 1
    %v588 = vpop.permute.xlu0 %587
    %589 = vrot.lane.b32.xlu0 %v580, 1
    %v590 = vpop.permute.xlu0 %589
    %v591 = vsel %vm416, %v584, %v588
    %v592 = vsel %vm416, %v586, %v590
    %v593 = vsel %vm416, %v588, %v584
    %v594 = vsel %vm416, %v590, %v586
    %v595 = vsel %vm431, %v593, 0.0
    %v596 = vsel %vm432, %v591, 0.0
    %v597 = vsel %vm431, %v594, 0.0
    %v598 = vsel %vm432, %v592, 0.0
    %599 = vrot.lane.b32.xlu0 %v577, 127
    %v600 = vpop.permute.xlu0 %599
    %601 = vrot.lane.b32.xlu0 %v579, 127
    %v602 = vpop.permute.xlu0 %601
    %603 = vrot.lane.b32.xlu0 %v578, 127
    %v604 = vpop.permute.xlu0 %603
    %605 = vrot.lane.b32.xlu0 %v580, 127
    %v606 = vpop.permute.xlu0 %605
    %v607 = vsel %vm445, %v600, %v604
    %v608 = vsel %vm445, %v602, %v606
    %v609 = vsel %vm445, %v604, %v600
    %v610 = vsel %vm445, %v606, %v602
    %v611 = vsel %vm460, %v607, 0.0
    %v612 = vsel %vm461, %v609, 0.0
    %v613 = vsel %vm460, %v608, 0.0
    %v614 = vsel %vm461, %v610, 0.0
    %v615 = vpack.c.bf16 %v597, %v595
    %v616 = vpack.c.bf16 %v598, %v596
    %v617 = vpack.c.bf16 %v579, %v577
    %v618 = vpack.c.bf16 %v580, %v578
    %v619 = vpack.c.bf16 %v613, %v611
    %v620 = vpack.c.bf16 %v614, %v612
    %v623 = vunpack.c.l.b16 %v581
    %v624 = vunpack.c.l.b16 %v582
    %v625 = vpack.c.b16 %v624, %v623
    %v627 = vsel %vm477, %v625, 0
    %629 = vmatprep.subr.bf16.mxu0 %v616
    %630 = vmatpush1.bf16.msra.mxu0 %v615
    %631 = vmatprep.subr.bf16.mxu0 %v618
    %632 = vmatpush1.bf16.msra.mxu0 %v617
    %633 = vmatprep.subr.bf16.mxu0 %v620
    %634 = vmatpush1.bf16.msra.mxu0 %v619
    %635 = vmatprep.subr.bf16.mxu0 0
    %636 = vmatpush1.bf16.msra.mxu0 0
    %637 = vmatprep.subr.bf16.mxu0 0
    %638 = vmatpush1.bf16.msra.mxu0 0
    %639 = vmatprep.subr.bf16.mxu0 0
    %640 = vmatpush1.bf16.msra.mxu0 0
    %641 = vmatprep.subr.bf16.mxu0 0
    %642 = vmatpush1.bf16.msra.mxu0 0
    %643 = vmatprep.subr.bf16.mxu0 0
    %644 = vmatpush1.bf16.msra.mxu0 0
    %645 = vmatprep.subr.bf16.mxu0 0
    %646 = vmatpush1.bf16.msra.mxu0 0
    %647 = vmatprep.subr.bf16.mxu0 0
    %648 = vmatpush1.bf16.msra.mxu0 0
    %649 = vmatprep.subr.bf16.mxu0 0
    %650 = vmatpush1.bf16.msra.mxu0 0
    %651 = vmatprep.subr.bf16.mxu0 0
    %652 = vmatpush1.bf16.msra.mxu0 0
    %653 = vmatprep.subr.bf16.mxu0 0
    %654 = vmatpush1.bf16.msra.mxu0 0
    %655 = vmatprep.subr.bf16.mxu0 0
    %656 = vmatpush1.bf16.msra.mxu0 0
    %657 = vmatprep.subr.bf16.mxu0 0
    %658 = vmatpush1.bf16.msra.mxu0 0
    %659 = vmatprep.subr.bf16.mxu0 0
    %660 = vmatpush1.bf16.msra.mxu0 0
    %661 = vmatprep.mubr.bf16.mxu0 0
    %662 = vmatmul.mubr.bf16.gmra.mrb[0].mxu0 %v627
    %v663 = vpop.f32.mrb[0].mxu0
    %v664 = vadd.f32 %v150, %v663
    %v665 = vpop.f32.mrb[0].mxu0
    %v666 = vadd.f32 %v152, %v665
    %v667 = vpop.f32.mrb[0].mxu0
    %v668 = vadd.f32 %v154, %v667
    %v669 = vpop.f32.mrb[0].mxu0
    %v670 = vadd.f32 %v156, %v669
    %671 = vdwg.mxu0
    %v672 = vmul.f32 %v664, 0.70710677
    %v673 = vmul.f32 %v666, 0.70710677
    %v674 = vmul.f32 %v668, 0.70710677
    %v675 = vmul.f32 %v670, 0.70710677
    %676 = vst [vmem:[#allocation7] sm:$0xff] %v672
    %677 = vst [vmem:[#allocation7 + $0x8] sm:$0xff] %v673
    %678 = vst [vmem:[#allocation7 + $0x10] sm:$0xff] %v674
    %679 = vst [vmem:[#allocation7 + $0x18] sm:$0xff] %v675
    // Predicated region
    $region34: #{tpu_custom_call.1} parent=1 // pred_check
      _
    $region35: #{tpu_custom_call.1} parent=1 // pred_check_branch
      %681 = sbr.rel (0) target = $region37
    $region36: #{tpu_custom_call.1} parent=1 // pred_region
      %s683 = ssub.s32 512, 512
      %684 = vsyncadd [#allocation4], %s683
      %s685 = sshll.u32 [#allocation7], 4
      %s686 = int_to_ptr.vmem [resolvable:$true] %s685
      %691 = dma.vmem_to_hbm [thread:$0]  %s686, 512, %s6, [#allocation4], 256, 256, 16
    $region37: #{tpu_custom_call.1} parent=1 // pred_fallthru
      _
    // Predicated region
    $region38: #{tpu_custom_call.1} parent=1 // pred_check
      _
    $region39: #{tpu_custom_call.1} parent=1 // pred_check_branch
      %693 = sbr.rel (0) target = $region41
    $region40: #{tpu_custom_call.1} parent=1 // pred_region
      %694 = dma.done [#allocation4], 512
    $region41: #{tpu_custom_call.1} parent=1 // pred_fallthru
      _
    %695 = vsyncpa [#allocation3], 1
    %696 = vsyncpa [#allocation6], 1
    %697 = vsyncpa [#allocation4], 1

</llo_original>
